<compile_context>
chip_gen: v7x
topology: tpu7x:2x2x1
jax: 0.10.0
libtpu: 0.0.40
codegen_flags: <defaults>
</compile_context>

<pallas_src>
import jax
import jax.numpy as jnp
from jax.experimental import pallas as pl
from jax.experimental.pallas import tpu as pltpu


def transition_kernel(x_ref, w_ref, thr_ref, o_ref):
    """One batch element per grid step.

    x_ref:   (9*Cin, H*W)  im2col activation block (batch squeezed), lane dim = H*W
    w_ref:   (Cout, 9*Cin) sign-binarized conv weights with the BN-scale sign folded in
    thr_ref: (Cout, 1)     per-channel BN/sign threshold  (= -shift/|scale|)
    o_ref:   (Cout, H*W)   binarized output (+1 / -1), NCHW-native (lane dim = H*W)
    """
    # Single MXU matmul: (Cout, 9Cin) @ (9Cin, H*W) with f32 accumulation.
    acc = jnp.dot(w_ref[...], x_ref[...], preferred_element_type=jnp.float32)
    # Folded BatchNorm + BinaryTanh: sign(scale*acc + shift) == (acc' >= thr ? +1 : -1)
    # with acc' already carrying sign(scale) via the folded weights.
    o_ref[...] = jnp.where(acc >= thr_ref[...],
                           jnp.float32(1.0), jnp.float32(-1.0)).astype(o_ref.dtype)


def transition_forward(x_nchw, conv_w, bn_gamma, bn_beta, bn_mean, bn_var, eps=1e-5):
    """Wrapper: NCHW in, NCHW out (matches the PyTorch module)."""
    N, Cin, H, W = x_nchw.shape
    Cout = conv_w.shape[0]
    KH, KW = conv_w.shape[2], conv_w.shape[3]
    K = KH * KW * Cin
    HW = H * W

    # BinConv2d: binarize weights with sign(); flatten to (Cout, KH*KW*Cin) with row
    # ordering (kh, kw, cin) to match the im2col row ordering below.
    w_bin = jnp.where(conv_w >= 0.0, 1.0, -1.0).astype(jnp.float32)
    w_mat = jnp.transpose(w_bin, (0, 2, 3, 1)).reshape(Cout, K)

    # Fold BatchNorm (running stats) + sign:
    #   scale = gamma / sqrt(var + eps), shift = beta - mean*scale
    #   y >= 0  <=>  sign(scale)*acc >= -shift/|scale|
    # Fold sign(scale) into the (+-1) weights; threshold becomes -shift/|scale|.
    # scale == 0 handled with +-inf thresholds (output = sign(shift) regardless of acc).
    inv_std = 1.0 / jnp.sqrt(bn_var + eps)
    scale = bn_gamma * inv_std
    shift = bn_beta - bn_mean * scale
    sgn = jnp.where(scale >= 0.0, 1.0, -1.0).astype(jnp.float32)
    abs_scale = jnp.abs(scale)
    safe_abs = jnp.where(abs_scale == 0.0, 1.0, abs_scale)
    thr = jnp.where(abs_scale == 0.0,
                    jnp.where(shift >= 0.0, -jnp.inf, jnp.inf),
                    -shift / safe_abs)
    w_eff = (sgn.reshape(Cout, 1) * w_mat).astype(jnp.float32)   # still +-1
    thr = thr.reshape(Cout, 1).astype(jnp.float32)

    # im2col (pad fused), NCHW-native: (N, KH*KW*Cin, H*W). Lane dim = H*W.
    x_pad = jnp.pad(x_nchw.astype(jnp.float32), ((0, 0), (0, 0), (1, 1), (1, 1)))
    taps = [x_pad[:, :, kh:kh + H, kw:kw + W]
            for kh in range(KH) for kw in range(KW)]        # each (N, Cin, H, W)
    x_col = jnp.stack(taps, axis=1).reshape(N, K, HW)       # (N, 9*Cin, H*W)

    out = pl.pallas_call(
        transition_kernel,
        out_shape=jax.ShapeDtypeStruct((N, Cout, HW), jnp.float32),
        grid=(N,),
        in_specs=[
            pl.BlockSpec((pl.Squeezed(), K, HW), lambda n: (n, 0, 0)),
            pl.BlockSpec((Cout, K), lambda n: (0, 0)),
            pl.BlockSpec((Cout, 1), lambda n: (0, 0)),
        ],
        out_specs=pl.BlockSpec((pl.Squeezed(), Cout, HW), lambda n: (n, 0, 0)),
        compiler_params=pltpu.CompilerParams(
            dimension_semantics=("parallel",)),
    )(x_col, w_eff, thr)

    # (N, Cout, H*W) -> (N, Cout, H, W): contiguous reshape, no data movement.
    return out.reshape(N, Cout, H, W)


def transition_reference(x_nchw, conv_w, bn_gamma, bn_beta, bn_mean, bn_var, eps=1e-5):
    """Pure-JAX reference of the same forward. Returns (sign output, pre-sign y)."""
    w_bin = jnp.where(conv_w >= 0.0, 1.0, -1.0).astype(jnp.float32)
    conv = jax.lax.conv_general_dilated(
        x_nchw.astype(jnp.float32), w_bin,
        window_strides=(1, 1), padding=((1, 1), (1, 1)),
        dimension_numbers=("NCHW", "OIHW", "NCHW"))
    inv_std = 1.0 / jnp.sqrt(bn_var + eps)
    scale = (bn_gamma * inv_std).reshape(1, -1, 1, 1)
    shift = (bn_beta - bn_mean * bn_gamma * inv_std).reshape(1, -1, 1, 1)
    y = conv * scale + shift
    return jnp.where(y >= 0.0, 1.0, -1.0).astype(jnp.float32), y


if __name__ == "__main__":
    # Shapes consistent with the module: batch=2, in_planes=4, out_planes=8,
    # spatial 16x16, kernel_size=3, stride=1, padding=1.
    N, Cin, Cout, H, W = 2, 4, 8, 16, 16

    key = jax.random.PRNGKey(0)
    k_x, k_w, k_g, k_b, k_m, k_v = jax.random.split(key, 6)

    x = jax.random.normal(k_x, (N, Cin, H, W), dtype=jnp.float32)
    conv_w = jax.random.normal(k_w, (Cout, Cin, 3, 3), dtype=jnp.float32) * 0.1
    bn_gamma = 1.0 + 0.1 * jax.random.normal(k_g, (Cout,), dtype=jnp.float32)
    bn_beta = 0.1 * jax.random.normal(k_b, (Cout,), dtype=jnp.float32)
    bn_mean = 0.1 * jax.random.normal(k_m, (Cout,), dtype=jnp.float32)
    bn_var = jnp.abs(jax.random.normal(k_v, (Cout,), dtype=jnp.float32)) + 0.5

    out = jax.jit(transition_forward)(x, conv_w, bn_gamma, bn_beta, bn_mean, bn_var)
    out = jax.block_until_ready(out)

    ref_sign, ref_pre = transition_reference(x, conv_w, bn_gamma, bn_beta, bn_mean, bn_var)
    assert out.shape == (N, Cout, H, W), out.shape

    # Binary (+-1) outputs must match the reference exactly, except where the reference
    # pre-activation sits numerically on the BN/sign threshold (ULP-level ties can
    # resolve differently under a different f32 accumulation order).
    borderline = jnp.abs(ref_pre) <= 1e-4
    mismatch = (out != ref_sign) & (~borderline)
    assert not bool(jnp.any(mismatch)), "Pallas output mismatch vs JAX reference"

    print("KERNEL_OK")
</pallas_src>

<mosaic_0001>
module attributes {stable_mosaic.version = 11 : i64} {
  func.func @transition_kernel(%arg0: i32, %arg1: memref<1x36x256xf32, #tpu.memory_space<vmem>>, %arg2: memref<8x36xf32, #tpu.memory_space<vmem>>, %arg3: memref<8x1xf32, #tpu.memory_space<vmem>>, %arg4: memref<1x8x256xf32, #tpu.memory_space<vmem>>) attributes {dimension_semantics = [#tpu.dimension_semantics<parallel>], iteration_bounds = array<i64: 2>, scalar_prefetch = 0 : i64, scratch_operands = 0 : i64, tpu.core_type = #tpu.core_type<tc>, window_params = [{transform_indices = @transform_0, window_bounds = array<i64: 1, 36, 256>}, {pipeline_mode = #tpu.pipeline_mode<synchronous>, transform_indices = @transform_1, window_bounds = array<i64: 8, 36>}, {pipeline_mode = #tpu.pipeline_mode<synchronous>, transform_indices = @transform_2, window_bounds = array<i64: 8, 1>}, {transform_indices = @transform_3, window_bounds = array<i64: 1, 8, 256>}]} {
    %c0 = arith.constant 0 : index
    %c0_0 = arith.constant 0 : index
    %0 = vector.load %arg2[%c0, %c0_0] : memref<8x36xf32, #tpu.memory_space<vmem>>, vector<8x36xf32>
    %c0_1 = arith.constant 0 : index
    %c0_2 = arith.constant 0 : index
    %c0_3 = arith.constant 0 : index
    %1 = vector.load %arg1[%c0_1, %c0_2, %c0_3] : memref<1x36x256xf32, #tpu.memory_space<vmem>>, vector<1x36x256xf32>
    %2 = vector.shape_cast %1 : vector<1x36x256xf32> to vector<36x256xf32>
    %cst = arith.constant dense<0.000000e+00> : vector<8x256xf32>
    %3 = tpu.matmul %0, %2, %cst {dimension_numbers = #tpu.dot_dimension_numbers<[1], [0], [0], [1], [0, 0, 1, 1], [], []>} : vector<8x36xf32>, vector<36x256xf32>, vector<8x256xf32> -> vector<8x256xf32>
    %c0_4 = arith.constant 0 : index
    %c0_5 = arith.constant 0 : index
    %4 = vector.load %arg3[%c0_4, %c0_5] : memref<8x1xf32, #tpu.memory_space<vmem>>, vector<8x1xf32>
    %5 = vector.broadcast %4 : vector<8x1xf32> to vector<8x256xf32>
    %6 = arith.cmpf oge, %3, %5 : vector<8x256xf32>
    %cst_6 = arith.constant 1.000000e+00 : f32
    %cst_7 = arith.constant -1.000000e+00 : f32
    %7 = vector.broadcast %cst_6 : f32 to vector<8x256xf32>
    %8 = vector.broadcast %cst_7 : f32 to vector<8x256xf32>
    %9 = arith.select %6, %7, %8 : vector<8x256xi1>, vector<8x256xf32>
    %c0_8 = arith.constant 0 : index
    %c0_9 = arith.constant 0 : index
    %c0_10 = arith.constant 0 : index
    %10 = vector.load %arg4[%c0_8, %c0_9, %c0_10] : memref<1x8x256xf32, #tpu.memory_space<vmem>>, vector<1x8x256xf32>
    %11 = vector.shape_cast %10 : vector<1x8x256xf32> to vector<8x256xf32>
    %12 = vector.shape_cast %9 : vector<8x256xf32> to vector<1x8x256xf32>
    tpu.vector_store %arg4[%c0_8, %c0_9, %c0_10], %12 {strides = array<i32>} : memref<1x8x256xf32, #tpu.memory_space<vmem>>, vector<1x8x256xf32>,
    return
  }
  func.func @transform_0(%arg0: i32) -> (i32, i32, i32) {
    %c0_i32 = arith.constant 0 : i32
    %c0_i32_0 = arith.constant 0 : i32
    %c0_i32_1 = arith.constant 0 : i32
    return %arg0, %c0_i32, %c0_i32_0 : i32, i32, i32
  }
  func.func @transform_1(%arg0: i32) -> (i32, i32) {
    %c0_i32 = arith.constant 0 : i32
    %c0_i32_0 = arith.constant 0 : i32
    %c0_i32_1 = arith.constant 0 : i32
    return %c0_i32, %c0_i32_0 : i32, i32
  }
  func.func @transform_2(%arg0: i32) -> (i32, i32) {
    %c0_i32 = arith.constant 0 : i32
    %c0_i32_0 = arith.constant 0 : i32
    %c0_i32_1 = arith.constant 0 : i32
    return %c0_i32, %c0_i32_0 : i32, i32
  }
  func.func @transform_3(%arg0: i32) -> (i32, i32, i32) {
    %c0_i32 = arith.constant 0 : i32
    %c0_i32_0 = arith.constant 0 : i32
    %c0_i32_1 = arith.constant 0 : i32
    return %arg0, %c0_i32, %c0_i32_0 : i32, i32, i32
  }
}

</mosaic_0001>

<llo_original>
// kernel: transition_forward.1
$region0: #{transition_forward.1}
  #allocation0 [shape = 'u32[]', space=smem, size = 0x4, offset = 0x4, fixed_abs, tag = 'smem constant byte address 0x4 - core index']
  #allocation1 [shape = 'u32[144,128]{1,0:T(1,128)}', space=vmem, size = 0x12000, scoped, tag = 'internal scratch']
  %s0 = inlined_call_operand.vmem [shape: f32[2,36,256], index: 0, kind: input, shape index: {}]
  %s1 = inlined_call_operand.vmem [shape: f32[8,36], index: 1, kind: input, shape index: {}]
  %s2 = inlined_call_operand.vmem [shape: f32[8,1], index: 2, kind: input, shape index: {}]
  %s3 = inlined_call_operand.vmem [shape: f32[2,8,256], index: 3, kind: output, shape index: {}]
  %s4 = sld [smem:[#allocation0]]
  $region45: #{transition_forward.1} parent=0
    _
  %s6 = ssub.s32 1, %s4
  %s7 = scalar_select 0, %s6, %s4
  loop: start=0, step=1, limit=4
  $region2: #{transition_forward.1} parent=0 // loop_pre_header
    _
  $region3: #{transition_forward.1} parent=0 // loop_header
    %s9 = sphi 0, %s13
    %p10 = scmp.ge.s32.totalorder %s9, 4
    %s19 = sphi 0, %s21
    %s22 = sphi 0, %s19
    %s23 = sphi 0, %s22
    %s39 = sphi 0, %s23
    %s43 = sphi 0, %s43
    %s45 = sphi 0, %s43
    %s46 = sphi 0, %s45
    %s60 = sphi 0, %s46
    %s64 = sphi 0, %s64
    %s66 = sphi 0, %s64
    %s67 = sphi 0, %s66
    %s81 = sphi 0, %s67
    %s87 = sphi 0, %s89
    %s90 = sphi 0, %s87
    %s91 = sphi 0, %s90
    %s107 = sphi 0, %s91
  $region4: #{transition_forward.1} parent=0 // loop_header_branch
    %12 = sbr.rel (%p10) target = $region8
  $region5: #{transition_forward.1} parent=0 // loop_body
    %s14 = ssub.s32 %s9, 1
    %s15 = ssub.s32 %s9, 2
    %s16 = sadd.s32 %s9, 1
    %s17 = ssub.s32 %s9, %s16
    %p18 = scmp.eq.s32.totalorder %s17, 0
    %s20 = sadd.s32 %s19, 1
    %s21 = scalar_select %p18, %s19, %s20
    %p24 = pneg %p18
    %p25 = scmp.eq.s32.totalorder %s9, 1
    %p26 = por %p24, %p25
    %p27 = scmp.ne.s32.totalorder %s19, %s22
    %p28 = scmp.eq.s32.totalorder %s9, 0
    %p29 = por %p27, %p28
    %p30 = scmp.ne.s32.totalorder %s19, %s22
    %p31 = scmp.eq.s32.totalorder %s14, 1
    %p32 = por %p30, %p31
    %p33 = scmp.ne.s32.totalorder %s22, %s23
    %p34 = scmp.eq.s32.totalorder %s14, 0
    %p35 = por %p33, %p34
    %p36 = scmp.ne.s32.totalorder %s22, %s23
    %p37 = scmp.eq.s32.totalorder %s15, 1
    %p38 = por %p36, %p37
    %p40 = scmp.ne.s32.totalorder %s23, %s39
    %p41 = scmp.eq.s32.totalorder %s15, 0
    %p42 = por %p40, %p41
    %s44 = sadd.s32 %s43, 1
    %p47 = scmp.eq.s32.totalorder %s9, 1
    %p48 = scmp.ne.s32.totalorder %s43, %s45
    %p49 = scmp.eq.s32.totalorder %s9, 0
    %p50 = por %p48, %p49
    %p51 = scmp.ne.s32.totalorder %s43, %s45
    %p52 = scmp.eq.s32.totalorder %s14, 1
    %p53 = por %p51, %p52
    %p54 = scmp.ne.s32.totalorder %s45, %s46
    %p55 = scmp.eq.s32.totalorder %s14, 0
    %p56 = por %p54, %p55
    %p57 = scmp.ne.s32.totalorder %s45, %s46
    %p58 = scmp.eq.s32.totalorder %s15, 1
    %p59 = por %p57, %p58
    %p61 = scmp.ne.s32.totalorder %s46, %s60
    %p62 = scmp.eq.s32.totalorder %s15, 0
    %p63 = por %p61, %p62
    %s65 = sadd.s32 %s64, 1
    %p68 = scmp.eq.s32.totalorder %s9, 1
    %p69 = scmp.ne.s32.totalorder %s64, %s66
    %p70 = scmp.eq.s32.totalorder %s9, 0
    %p71 = por %p69, %p70
    %p72 = scmp.ne.s32.totalorder %s64, %s66
    %p73 = scmp.eq.s32.totalorder %s14, 1
    %p74 = por %p72, %p73
    %p75 = scmp.ne.s32.totalorder %s66, %s67
    %p76 = scmp.eq.s32.totalorder %s14, 0
    %p77 = por %p75, %p76
    %p78 = scmp.ne.s32.totalorder %s66, %s67
    %p79 = scmp.eq.s32.totalorder %s15, 1
    %p80 = por %p78, %p79
    %p82 = scmp.ne.s32.totalorder %s67, %s81
    %p83 = scmp.eq.s32.totalorder %s15, 0
    %p84 = por %p82, %p83
    %s85 = ssub.s32 %s9, %s16
    %p86 = scmp.eq.s32.totalorder %s85, 0
    %s88 = sadd.s32 %s87, 1
    %s89 = scalar_select %p86, %s87, %s88
    %p92 = pneg %p86
    %p93 = scmp.eq.s32.totalorder %s9, 1
    %p94 = por %p92, %p93
    %p95 = scmp.ne.s32.totalorder %s87, %s90
    %p96 = scmp.eq.s32.totalorder %s9, 0
    %p97 = por %p95, %p96
    %p98 = scmp.ne.s32.totalorder %s87, %s90
    %p99 = scmp.eq.s32.totalorder %s14, 1
    %p100 = por %p98, %p99
    %p101 = scmp.ne.s32.totalorder %s90, %s91
    %p102 = scmp.eq.s32.totalorder %s14, 0
    %p103 = por %p101, %p102
    %p104 = scmp.ne.s32.totalorder %s90, %s91
    %p105 = scmp.eq.s32.totalorder %s15, 1
    %p106 = por %p104, %p105
    %p108 = scmp.ne.s32.totalorder %s91, %s107
    %p109 = scmp.eq.s32.totalorder %s15, 0
    %p110 = por %p108, %p109
    %p111 = scmp.le.s32.totalorder 1, %s9
    %p112 = scmp.lt.s32.totalorder %s9, 3
    %p113 = pnand %p111, %p112
    %p114 = pneg %p113
    // Predicated region
    $region9: #{transition_forward.1} parent=5 // pred_check
      _
    $region10: #{transition_forward.1} parent=5 // pred_check_branch
      %116 = sbr.rel (%p113) target = $region12
    $region11: #{transition_forward.1} parent=5 // pred_region
      %s117 = ssub.s32 %s9, 1
      // Predicated region
      $region13: #{transition_forward.1} parent=11 // pred_check
        %p118 = pneg %p56
      $region14: #{transition_forward.1} parent=11 // pred_check_branch
        %120 = sbr.rel (%p118) target = $region16
      $region15: #{transition_forward.1} parent=11 // pred_region
        _
      $region16: #{transition_forward.1} parent=11 // pred_fallthru
        _
      // Predicated region
      $region17: #{transition_forward.1} parent=11 // pred_check
        %p121 = pneg %p77
      $region18: #{transition_forward.1} parent=11 // pred_check_branch
        %123 = sbr.rel (%p121) target = $region20
      $region19: #{transition_forward.1} parent=11 // pred_region
        _
      $region20: #{transition_forward.1} parent=11 // pred_fallthru
        _
    $region12: #{transition_forward.1} parent=5 // pred_fallthru
      _
    %p124 = scmp.lt.s32.totalorder %s9, 2
    // Predicated region
    $region21: #{transition_forward.1} parent=5 // pred_check
      %p125 = pneg %p124
    $region22: #{transition_forward.1} parent=5 // pred_check_branch
      %127 = sbr.rel (%p125) target = $region24
    $region23: #{transition_forward.1} parent=5 // pred_region
      // Predicated region
      $region25: #{transition_forward.1} parent=23 // pred_check
        %p128 = pneg %p29
      $region26: #{transition_forward.1} parent=23 // pred_check_branch
        %130 = sbr.rel (%p128) target = $region28
      $region27: #{transition_forward.1} parent=23 // pred_region
        %p131 = scmp.lt.s32.totalorder %s9, 1
        %s132 = scalar_select %p131, %s9, 1
        %s133 = smul.addr %s132, 10
        %s134 = smul.addr %s133, 8
        %s135 = scalar_lea.vmem %s0, %s134
      $region28: #{transition_forward.1} parent=23 // pred_fallthru
        _
    $region24: #{transition_forward.1} parent=5 // pred_fallthru
      _
    %p136 = scmp.le.s32.totalorder 1, %s9
    %p137 = scmp.lt.s32.totalorder %s9, 3
    %p138 = pnand %p136, %p137
    %p139 = pneg %p138
    // Predicated region
    $region29: #{transition_forward.1} parent=5 // pred_check
      _
    $region30: #{transition_forward.1} parent=5 // pred_check_branch
      %141 = sbr.rel (%p138) target = $region32
    $region31: #{transition_forward.1} parent=5 // pred_region
      %s142 = ssub.s32 %s9, 1
      %p143 = scmp.lt.s32.totalorder %s14, 1
      %s144 = scalar_select %p143, %s14, 1
      %s145 = smul.addr %s144, 10
      %s146 = smul.addr %s145, 8
      %s147 = scalar_lea.vmem %s0, %s146
      %p148 = pneg %p35
      %p149 = pneg %p32
      %p150 = pneg %p56
      %p151 = pneg %p53
      %p152 = pneg %p77
      %p153 = pneg %p74
      %p154 = pneg %p103
      %p155 = pneg %p100
      %p156 = scmp.lt.s32.totalorder %s14, 1
      %s157 = scalar_select %p156, %s14, 1
      %s158 = smul.addr %s157, 2
      %s159 = smul.addr %s158, 8
      %s160 = scalar_lea.vmem %s3, %s159
      %p161 = scmp.lt.s32.totalorder %s14, 1
      %s162 = scalar_select %p161, %s14, 1
      %s163 = smul.addr %s162, 10
      %s164 = smul.addr %s163, 8
      %s165 = scalar_lea.vmem %s0, %s164
      %p166 = scmp.lt.s32.totalorder %s14, 1
      %s167 = scalar_select %p166, %s14, 1
      %s168 = smul.addr %s167, 2
      %s169 = smul.addr %s168, 8
      %s170 = scalar_lea.vmem %s3, %s169
      %v171 = vld [vmem:[%s1] sm:$0xff]
      %v172 = vld [vmem:[%s165] sm:$0xff]
      %v173 = vld [vmem:[%s165 + $0x8] sm:$0xff]
      %v174 = vld [vmem:[%s165 + $0x10] sm:$0xff]
      %v175 = vld [vmem:[%s165 + $0x18] sm:$0xff]
      %v176 = vld [vmem:[%s165 + $0x20] sm:$0xff]
      %v177 = vld [vmem:[%s165 + $0x28] sm:$0xff]
      %v178 = vld [vmem:[%s165 + $0x30] sm:$0xff]
      %v179 = vld [vmem:[%s165 + $0x38] sm:$0xff]
      %v180 = vld [vmem:[%s165 + $0x40] sm:$0xf]
      %v181 = vld [vmem:[%s165 + $0x48] sm:$0xf]
      %vm182 = vcmask 293888
      %v184 = vsel %vm182, %v171, 0
      %vm186 = vcmask 1043456
      %v188 = vsel %vm186, %v180, 0
      %v191 = vsel %vm186, %v181, 0
      %193 = vmatprep.subr.mxu0 %v173
      %194 = vmatpush1.msra.mxu0 %v172
      %195 = vmatprep.subr.mxu0 %v175
      %196 = vmatpush1.msra.mxu0 %v174
      %197 = vmatprep.subr.mxu0 %v177
      %198 = vmatpush1.msra.mxu0 %v176
      %199 = vmatprep.subr.mxu0 %v179
      %200 = vmatpush1.msra.mxu0 %v178
      %201 = vmatprep.subr.mxu0 %v191
      %202 = vmatpush1.msra.mxu0 %v188
      %203 = vmatprep.subr.mxu0 0.0
      %204 = vmatpush1.msra.mxu0 0.0
      %205 = vmatprep.subr.mxu0 0.0
      %206 = vmatpush1.msra.mxu0 0.0
      %207 = vmatprep.subr.mxu0 0.0
      %208 = vmatpush1.msra.mxu0 0.0
      %209 = vmatprep.subr.mxu0 0.0
      %210 = vmatpush1.msra.mxu0 0.0
      %211 = vmatprep.subr.mxu0 0.0
      %212 = vmatpush1.msra.mxu0 0.0
      %213 = vmatprep.subr.mxu0 0.0
      %214 = vmatpush1.msra.mxu0 0.0
      %215 = vmatprep.subr.mxu0 0.0
      %216 = vmatpush1.msra.mxu0 0.0
      %217 = vmatprep.subr.mxu0 0.0
      %218 = vmatpush1.msra.mxu0 0.0
      %219 = vmatprep.subr.mxu0 0.0
      %220 = vmatpush1.msra.mxu0 0.0
      %221 = vmatprep.subr.mxu0 0.0
      %222 = vmatpush1.msra.mxu0 0.0
      %223 = vmatprep.subr.mxu0 0.0
      %224 = vmatpush1.msra.mxu0 0.0
      %225 = vmatprep.subr.mxu0 0.0
      %226 = vmatpush1.msra.mxu0 0.0
      %227 = vmatprep.subr.mxu0 0.0
      %228 = vmatpush1.msra.mxu0 0.0
      %229 = vmatprep.subr.mxu0 0.0
      %230 = vmatpush1.msra.mxu0 0.0
      %231 = vmatprep.subr.mxu0 0.0
      %232 = vmatpush1.msra.mxu0 0.0
      %233 = vmatprep.subr.mxu0 0.0
      %234 = vmatpush1.msra.mxu0 0.0
      %235 = vmatprep.subr.mxu0 0.0
      %236 = vmatpush1.msra.mxu0 0.0
      %237 = vmatprep.subr.mxu0 0.0
      %238 = vmatpush1.msra.mxu0 0.0
      %239 = vmatprep.subr.mxu0 0.0
      %240 = vmatpush1.msra.mxu0 0.0
      %241 = vmatprep.subr.mxu0 0.0
      %242 = vmatpush1.msra.mxu0 0.0
      %243 = vmatprep.subr.mxu0 0.0
      %244 = vmatpush1.msra.mxu0 0.0
      %245 = vmatprep.subr.mxu0 0.0
      %246 = vmatpush1.msra.mxu0 0.0
      %247 = vmatprep.subr.mxu0 0.0
      %248 = vmatpush1.msra.mxu0 0.0
      %249 = vmatprep.subr.mxu0 0.0
      %250 = vmatpush1.msra.mxu0 0.0
      %251 = vmatprep.subr.mxu0 0.0
      %252 = vmatpush1.msra.mxu0 0.0
      %253 = vmatprep.subr.mxu0 0.0
      %254 = vmatpush1.msra.mxu0 0.0
      %255 = vmatprep.subr.mxu0 0.0
      %256 = vmatpush1.msra.mxu0 0.0
      %257 = vmatprep.mubr.f32.mxu0 0.0
      %258 = vmatmul.mubr.f32.gmra.mrb[0].mxu0 %v184
      %v259 = vpop.f32.mrb[0].mxu0
      %v260 = vadd.f32 0.0, %v259
      %v261 = vpop.f32.mrb[0].mxu0
      %v262 = vadd.f32 0.0, %v261
      %263 = vdwg.mxu0
      %v264 = vld [vmem:[%s2] sm:$0xff]
      %266 = vset.pattern.permute.xlu0 0
      %267 = vperm.xlu0 %266, %v264
      %v268 = vpop.permute.xlu0 %267
      %vm270 = vcmp.ge.f32.partialorder %v260, %v268
      %vm271 = vcmp.ge.f32.partialorder %v262, %v268
      %v272 = vsel %vm270, 1.0, -1.0
      %v273 = vsel %vm271, 1.0, -1.0
      %274 = vst [vmem:[%s170] sm:$0xff] %v272
      %275 = vst [vmem:[%s170 + $0x8] sm:$0xff] %v273
      %p276 = scmp.lt.s32.totalorder %s14, 1
      %s277 = scalar_select %p276, %s14, 1
      %s278 = smul.addr %s277, 2
      %s279 = smul.addr %s278, 8
      %s280 = scalar_lea.vmem %s3, %s279
      // Predicated region
      $region33: #{transition_forward.1} parent=31 // pred_check
        %p281 = pneg %p100
      $region34: #{transition_forward.1} parent=31 // pred_check_branch
        %283 = sbr.rel (%p281) target = $region36
      $region35: #{transition_forward.1} parent=31 // pred_region
        _
      $region36: #{transition_forward.1} parent=31 // pred_fallthru
        _
    $region32: #{transition_forward.1} parent=5 // pred_fallthru
      _
    %p284 = scmp.le.s32.totalorder 2, %s9
    // Predicated region
    $region37: #{transition_forward.1} parent=5 // pred_check
      %p285 = pneg %p284
    $region38: #{transition_forward.1} parent=5 // pred_check_branch
      %287 = sbr.rel (%p285) target = $region40
    $region39: #{transition_forward.1} parent=5 // pred_region
      %s288 = ssub.s32 %s9, 2
      // Predicated region
      $region41: #{transition_forward.1} parent=39 // pred_check
        %p289 = pneg %p106
      $region42: #{transition_forward.1} parent=39 // pred_check_branch
        %291 = sbr.rel (%p289) target = $region44
      $region43: #{transition_forward.1} parent=39 // pred_region
        %p292 = scmp.lt.s32.totalorder %s15, 1
        %s293 = scalar_select %p292, %s15, 1
        %s294 = smul.addr %s293, 2
        %s295 = smul.addr %s294, 8
        %s296 = scalar_lea.vmem %s3, %s295
      $region44: #{transition_forward.1} parent=39 // pred_fallthru
        _
    $region40: #{transition_forward.1} parent=5 // pred_fallthru
      _
  $region6: #{transition_forward.1} parent=0 // loop_footer
    %s13 = sadd.s32 1, %s9
  $region7: #{transition_forward.1} parent=0 // loop_footer_branch
    %8 = sbr.rel target = $region3
  $region8: #{transition_forward.1} parent=0 // loop_exit
    _

</llo_original>
